<compile_context>
chip_gen: v7x
topology: tpu7x:2x2x1
jax: 0.10.0
libtpu: 0.0.40
codegen_flags: <defaults>
</compile_context>

<pallas_src>
import functools

import jax
import jax.numpy as jnp
from jax.experimental import pallas as pl
from jax.experimental.pallas import tpu as pltpu

LANE = 128       # TPU lane width: pad HID/OUT feature dims to a multiple of this.


def _round_up(n, m):
    return ((n + m - 1) // m) * m


def _pad_axis(x, target, axis):
    pad = target - x.shape[axis]
    if pad <= 0:
        return x
    widths = [(0, 0)] * x.ndim
    widths[axis] = (0, pad)
    return jnp.pad(x, widths)


# ----------------------------------------------------------------------------
# Pallas kernel: fused frozen-MLP forward for one batch tile.
#   load f32 x -> cast bf16 (VPU) -> matmul (MXU, f32 acc) -> +bias (f32)
#   -> relu (f32) -> cast bf16 -> matmul (MXU, f32 acc) -> +bias -> store
# ----------------------------------------------------------------------------
def mlp_forward_kernel(x_ref, w1_ref, b1_ref, w2_ref, b2_ref, o_ref):
    x = x_ref[...].astype(jnp.bfloat16)                   # f32 tile read, in-kernel cast
    h = jnp.dot(x, w1_ref[...],
                preferred_element_type=jnp.float32)       # MXU, f32 accumulate
    h = jnp.maximum(h + b1_ref[...], 0.0)                 # f32 bias + ReLU (VPU)
    y = jnp.dot(h.astype(jnp.bfloat16), w2_ref[...],
                preferred_element_type=jnp.float32)       # MXU, f32 accumulate
    o_ref[...] = (y + b2_ref[...]).astype(o_ref.dtype)    # lane-dense store


# ----------------------------------------------------------------------------
# Wrapper: (maybe) pad batch rows, run the tiled kernel, slice back.
# ----------------------------------------------------------------------------
def pretrained_model_forward(x, params, tile_m=None, out_dtype=jnp.float32):
    """Frozen (adapter-merged) base-model forward via a fused Pallas kernel.

    `params` comes from `prepare_merged_params` (HID/OUT dims already padded
    to 128-lane multiples, weights cast to bf16 once after the f32 merge).
    """
    w1, b1, w2, b2 = params["w1"], params["b1"], params["w2"], params["b2"]
    out_dim = params["out_dim"]
    in_dim, hid_p = w1.shape           # K stays unpadded (last block dim == full dim)
    out_p = w2.shape[1]

    batch = x.shape[0]
    if tile_m is None:
        # Few grid steps: 1 tile for small batches; 2 tiles so each of v7x's
        # two TensorCores gets one (and v5e/v6e pay only ~0.7 us of step cost).
        m_pad = _round_up(batch, 16)                 # keeps tile_m a multiple of 8
        num_tiles = 2 if m_pad >= 256 else 1
        tile_m = m_pad // num_tiles
    else:
        m_pad = _round_up(batch, tile_m)
        num_tiles = m_pad // tile_m

    # Pad batch rows only when needed; feature dim stays unpadded and f32
    # (the bf16 cast happens inside the kernel).
    x_p = x if m_pad == batch else _pad_axis(x, m_pad, axis=0)

    grid = (num_tiles,)
    out_itemsize = jnp.dtype(out_dtype).itemsize

    flops = 2 * m_pad * in_dim * hid_p + 2 * m_pad * hid_p * out_p
    bytes_accessed = (m_pad * in_dim * 4            # x, f32
                      + in_dim * hid_p * 2          # w1, bf16
                      + hid_p * out_p * 2           # w2, bf16
                      + hid_p * 4 + out_p * 4       # biases, f32
                      + m_pad * out_p * out_itemsize)
    cost = pl.CostEstimate(flops=flops, transcendentals=0,
                           bytes_accessed=bytes_accessed)

    # Explicit VMEM budget: double-buffered x/out tiles + resident weights
    # (+ headroom); floored/capped so it is valid on v5e (16 MiB scoped
    # default) through v7x (64 MiB physical).
    vmem_need = (2 * (tile_m * in_dim * 4 + tile_m * out_p * out_itemsize)
                 + 2 * (in_dim * hid_p * 2 + hid_p * out_p * 2
                        + hid_p * 4 + out_p * 4)
                 + tile_m * hid_p * 4               # hidden activation
                 + (4 << 20))                       # margin for internal scratch
    vmem_limit = min(max(vmem_need, 16 << 20), 64 << 20)

    out_padded = pl.pallas_call(
        mlp_forward_kernel,
        out_shape=jax.ShapeDtypeStruct((m_pad, out_p), out_dtype),
        grid=grid,
        in_specs=[
            pl.BlockSpec((tile_m, in_dim), lambda i: (i, 0)),   # activations tile (f32, K unpadded)
            pl.BlockSpec((in_dim, hid_p), lambda i: (0, 0)),    # frozen merged W1 (bf16)
            pl.BlockSpec((1, hid_p), lambda i: (0, 0)),         # b1 (f32)
            pl.BlockSpec((hid_p, out_p), lambda i: (0, 0)),     # frozen merged W2 (bf16)
            pl.BlockSpec((1, out_p), lambda i: (0, 0)),         # b2 (f32)
        ],
        out_specs=pl.BlockSpec((tile_m, out_p), lambda i: (i, 0)),
        compiler_params=pltpu.CompilerParams(
            dimension_semantics=("parallel",),
            vmem_limit_bytes=vmem_limit),
        cost_estimate=cost,
    )(x_p, w1, b1, w2, b2)

    # Slice back to the logical (batch, OUT) shape.
    return out_padded[:batch, :out_dim]


# ----------------------------------------------------------------------------
# Parameter construction + adapter merge (host-side glue, done once).
# ----------------------------------------------------------------------------
def build_params(key, in_dim, hid_dim, out_dim, lora_rank=4, lora_scale=0.5):
    ks = jax.random.split(key, 8)
    # Frozen base-model weights (requires_grad=False in the PyTorch wrapper).
    w1 = jax.random.normal(ks[0], (in_dim, hid_dim), jnp.float32) * 0.1
    b1 = jax.random.normal(ks[1], (1, hid_dim), jnp.float32) * 0.1
    w2 = jax.random.normal(ks[2], (hid_dim, out_dim), jnp.float32) * 0.1
    b2 = jax.random.normal(ks[3], (1, out_dim), jnp.float32) * 0.1

    # LoRA adapters for each Linear layer; merge_adapter(): W_eff = W + s*A@B.
    a1 = jax.random.normal(ks[4], (in_dim, lora_rank), jnp.float32) * 0.05
    c1 = jax.random.normal(ks[5], (lora_rank, hid_dim), jnp.float32) * 0.05
    a2 = jax.random.normal(ks[6], (hid_dim, lora_rank), jnp.float32) * 0.05
    c2 = jax.random.normal(ks[7], (lora_rank, out_dim), jnp.float32) * 0.05

    # Merge in f32 (do NOT merge in bf16 — avoidable error).
    w1_eff = w1 + lora_scale * (a1 @ c1)
    w2_eff = w2 + lora_scale * (a2 @ c2)
    return w1_eff, b1, w2_eff, b2


def prepare_merged_params(w1, b1, w2, b2):
    """Pad HID/OUT dims to 128-lane multiples and cast matmul weights to bf16.

    Done ONCE after the f32 LoRA merge; biases stay f32 (elementwise path).
    The input (K) dim of W1 is left unpadded — the kernel's last block dim
    equals the full array dim, which Pallas allows.  Zero-padding keeps the
    padded hidden/output columns exactly zero, so the padded lanes are inert
    and sliced off in the wrapper.
    """
    in_dim, hid_dim = w1.shape
    out_dim = w2.shape[1]
    hid_p = _round_up(hid_dim, LANE)
    out_p = _round_up(out_dim, LANE)

    w1_p = _pad_axis(w1, hid_p, axis=1)                           # (IN, HID_P)
    w2_p = _pad_axis(_pad_axis(w2, hid_p, axis=0), out_p, axis=1)  # (HID_P, OUT_P)
    b1_p = _pad_axis(b1, hid_p, axis=1)
    b2_p = _pad_axis(b2, out_p, axis=1)

    # TODO(synk): fp8 weight cast (+ per-tensor scale in the f32 epilogue) for
    # v7x is possible here; kept bf16 for portability across v5e/v6e/v7x.
    return {
        "w1": w1_p.astype(jnp.bfloat16),
        "b1": b1_p,                       # f32
        "w2": w2_p.astype(jnp.bfloat16),
        "b2": b2_p,                       # f32
        "in_dim": in_dim,
        "hid_dim": hid_dim,
        "out_dim": out_dim,
    }


# ----------------------------------------------------------------------------
# References (pure JAX / XLA) for correctness checks.
# ----------------------------------------------------------------------------
def reference_forward_f32(x, w1, b1, w2, b2):
    h = jnp.maximum(x @ w1 + b1, 0.0)
    return h @ w2 + b2


def reference_forward_bf16(x, w1, b1, w2, b2):
    # Mirrors the kernel's numerics: bf16 matmul operands, f32 accumulation,
    # f32 bias-add / ReLU.
    h = jnp.dot(x.astype(jnp.bfloat16), w1.astype(jnp.bfloat16),
                preferred_element_type=jnp.float32) + b1
    h = jnp.maximum(h, 0.0)
    y = jnp.dot(h.astype(jnp.bfloat16), w2.astype(jnp.bfloat16),
                preferred_element_type=jnp.float32) + b2
    return y


if __name__ == "__main__":
    key = jax.random.PRNGKey(0)
    k_x, k_p = jax.random.split(key)

    # Small logical dims from the base model; batch=256 exercises the 2-tile
    # grid (one tile per v7x TensorCore, 2 cheap steps on v5e/v6e).
    BATCH, IN, HID, OUT = 256, 32, 64, 32
    x = jax.random.normal(k_x, (BATCH, IN), jnp.float32)

    w1, b1, w2, b2 = build_params(k_p, IN, HID, OUT)
    params = prepare_merged_params(w1, b1, w2, b2)   # merge + pad + bf16, once

    fwd = jax.jit(functools.partial(pretrained_model_forward, params=params))
    out = jax.block_until_ready(fwd(x))

    assert out.shape == (BATCH, OUT)

    # Tight check against a numerics-matched (bf16-operand) reference.
    ref_bf16 = reference_forward_bf16(x, w1, b1, w2, b2)
    assert jnp.allclose(out, ref_bf16, atol=1e-2, rtol=1e-2), \
        "mismatch vs bf16-matched reference"

    # Loose sanity check against the pure-f32 reference semantics.
    ref_f32 = reference_forward_f32(x, w1, b1, w2, b2)
    assert jnp.allclose(out, ref_f32, atol=1e-1, rtol=1e-1), \
        "mismatch vs f32 reference"

    # Also exercise a non-tile-aligned batch (partial-row pad path).
    out_small = jax.block_until_ready(
        jax.jit(functools.partial(pretrained_model_forward, params=params))(x[:100]))
    assert out_small.shape == (100, OUT)
    assert jnp.allclose(out_small, ref_bf16[:100], atol=1e-2, rtol=1e-2), \
        "mismatch on non-aligned batch"

    # TODO(synk): adapter remove/unmerge/reset management APIs and the regex
    # blacklist/whitelist module selection are host-side bookkeeping with no
    # kernel equivalent; only the (merged) forward path is lowered.
    print("KERNEL_OK")
</pallas_src>

<mosaic_0001>
module attributes {stable_mosaic.version = 11 : i64} {
  func.func @mlp_forward_kernel(%arg0: i32, %arg1: memref<128x32xf32, #tpu.memory_space<vmem>>, %arg2: memref<32x128xbf16, #tpu.memory_space<vmem>>, %arg3: memref<1x128xf32, #tpu.memory_space<vmem>>, %arg4: memref<128x128xbf16, #tpu.memory_space<vmem>>, %arg5: memref<1x128xf32, #tpu.memory_space<vmem>>, %arg6: memref<128x128xf32, #tpu.memory_space<vmem>>) attributes {dimension_semantics = [#tpu.dimension_semantics<parallel>], iteration_bounds = array<i64: 2>, scalar_prefetch = 0 : i64, scratch_operands = 0 : i64, tpu.core_type = #tpu.core_type<tc>, window_params = [{transform_indices = @transform_0, window_bounds = array<i64: 128, 32>}, {pipeline_mode = #tpu.pipeline_mode<synchronous>, transform_indices = @transform_1, window_bounds = array<i64: 32, 128>}, {pipeline_mode = #tpu.pipeline_mode<synchronous>, transform_indices = @transform_2, window_bounds = array<i64: 1, 128>}, {pipeline_mode = #tpu.pipeline_mode<synchronous>, transform_indices = @transform_3, window_bounds = array<i64: 128, 128>}, {pipeline_mode = #tpu.pipeline_mode<synchronous>, transform_indices = @transform_4, window_bounds = array<i64: 1, 128>}, {transform_indices = @transform_5, window_bounds = array<i64: 128, 128>}]} {
    %c0 = arith.constant 0 : index
    %c0_0 = arith.constant 0 : index
    %0 = vector.load %arg1[%c0, %c0_0] : memref<128x32xf32, #tpu.memory_space<vmem>>, vector<128x32xf32>
    %1 = arith.truncf %0 : vector<128x32xf32> to vector<128x32xbf16>
    %c0_1 = arith.constant 0 : index
    %c0_2 = arith.constant 0 : index
    %2 = vector.load %arg2[%c0_1, %c0_2] : memref<32x128xbf16, #tpu.memory_space<vmem>>, vector<32x128xbf16>
    %cst = arith.constant dense<0.000000e+00> : vector<128x128xf32>
    %3 = tpu.matmul %1, %2, %cst {dimension_numbers = #tpu.dot_dimension_numbers<[1], [0], [0], [1], [0, 0, 1, 1], [], []>} : vector<128x32xbf16>, vector<32x128xbf16>, vector<128x128xf32> -> vector<128x128xf32>
    %c0_3 = arith.constant 0 : index
    %c0_4 = arith.constant 0 : index
    %4 = vector.load %arg3[%c0_3, %c0_4] : memref<1x128xf32, #tpu.memory_space<vmem>>, vector<1x128xf32>
    %5 = vector.broadcast %4 : vector<1x128xf32> to vector<128x128xf32>
    %6 = arith.addf %3, %5 : vector<128x128xf32>
    %cst_5 = arith.constant 0.000000e+00 : f32
    %7 = vector.broadcast %cst_5 : f32 to vector<128x128xf32>
    %8 = arith.maximumf %6, %7 : vector<128x128xf32>
    %9 = arith.truncf %8 : vector<128x128xf32> to vector<128x128xbf16>
    %c0_6 = arith.constant 0 : index
    %c0_7 = arith.constant 0 : index
    %10 = vector.load %arg4[%c0_6, %c0_7] : memref<128x128xbf16, #tpu.memory_space<vmem>>, vector<128x128xbf16>
    %cst_8 = arith.constant dense<0.000000e+00> : vector<128x128xf32>
    %11 = tpu.matmul %9, %10, %cst_8 {dimension_numbers = #tpu.dot_dimension_numbers<[1], [0], [0], [1], [0, 0, 1, 1], [], []>} : vector<128x128xbf16>, vector<128x128xbf16>, vector<128x128xf32> -> vector<128x128xf32>
    %c0_9 = arith.constant 0 : index
    %c0_10 = arith.constant 0 : index
    %12 = vector.load %arg5[%c0_9, %c0_10] : memref<1x128xf32, #tpu.memory_space<vmem>>, vector<1x128xf32>
    %13 = vector.broadcast %12 : vector<1x128xf32> to vector<128x128xf32>
    %14 = arith.addf %11, %13 : vector<128x128xf32>
    %c0_11 = arith.constant 0 : index
    %c0_12 = arith.constant 0 : index
    %15 = vector.load %arg6[%c0_11, %c0_12] : memref<128x128xf32, #tpu.memory_space<vmem>>, vector<128x128xf32>
    tpu.vector_store %arg6[%c0_11, %c0_12], %14 {strides = array<i32>} : memref<128x128xf32, #tpu.memory_space<vmem>>, vector<128x128xf32>,
    return
  }
  func.func @transform_0(%arg0: i32) -> (i32, i32) {
    %c0_i32 = arith.constant 0 : i32
    %c0_i32_0 = arith.constant 0 : i32
    return %arg0, %c0_i32 : i32, i32
  }
  func.func @transform_1(%arg0: i32) -> (i32, i32) {
    %c0_i32 = arith.constant 0 : i32
    %c0_i32_0 = arith.constant 0 : i32
    %c0_i32_1 = arith.constant 0 : i32
    return %c0_i32, %c0_i32_0 : i32, i32
  }
  func.func @transform_2(%arg0: i32) -> (i32, i32) {
    %c0_i32 = arith.constant 0 : i32
    %c0_i32_0 = arith.constant 0 : i32
    %c0_i32_1 = arith.constant 0 : i32
    return %c0_i32, %c0_i32_0 : i32, i32
  }
  func.func @transform_3(%arg0: i32) -> (i32, i32) {
    %c0_i32 = arith.constant 0 : i32
    %c0_i32_0 = arith.constant 0 : i32
    %c0_i32_1 = arith.constant 0 : i32
    return %c0_i32, %c0_i32_0 : i32, i32
  }
  func.func @transform_4(%arg0: i32) -> (i32, i32) {
    %c0_i32 = arith.constant 0 : i32
    %c0_i32_0 = arith.constant 0 : i32
    %c0_i32_1 = arith.constant 0 : i32
    return %c0_i32, %c0_i32_0 : i32, i32
  }
  func.func @transform_5(%arg0: i32) -> (i32, i32) {
    %c0_i32 = arith.constant 0 : i32
    %c0_i32_0 = arith.constant 0 : i32
    return %arg0, %c0_i32 : i32, i32
  }
}

</mosaic_0001>

<llo_original>
// kernel: pretrained_model_forward.1
$region0: #{pretrained_model_forward.1}
  #allocation0 [shape = 'u32[]', space=smem, size = 0x4, offset = 0x4, fixed_abs, tag = 'smem constant byte address 0x4 - core index']
  #allocation1 [shape = 'u32[144,128]{1,0:T(1,128)}', space=vmem, size = 0x12000, scoped, tag = 'internal scratch']
  %s0 = inlined_call_operand.vmem [shape: f32[256,32], index: 0, kind: input, shape index: {}]
  %s1 = inlined_call_operand.vmem [shape: bf16[32,128], index: 1, kind: input, shape index: {}]
  %s2 = inlined_call_operand.vmem [shape: f32[1,128], index: 2, kind: input, shape index: {}]
  %s3 = inlined_call_operand.vmem [shape: bf16[128,128], index: 3, kind: input, shape index: {}]
  %s4 = inlined_call_operand.vmem [shape: f32[1,128], index: 4, kind: input, shape index: {}]
  %s5 = inlined_call_operand.vmem [shape: f32[256,128], index: 5, kind: output, shape index: {}]
  %s6 = sld [smem:[#allocation0]]
  $region53: #{pretrained_model_forward.1} parent=0
    _
  %s8 = ssub.s32 1, %s6
  %s9 = scalar_select 0, %s8, %s6
  loop: start=0, step=1, limit=4
  $region2: #{pretrained_model_forward.1} parent=0 // loop_pre_header
    _
  $region3: #{pretrained_model_forward.1} parent=0 // loop_header
    %s11 = sphi 0, %s15
    %p12 = scmp.ge.s32.totalorder %s11, 4
    %s21 = sphi 0, %s23
    %s24 = sphi 0, %s21
    %s25 = sphi 0, %s24
    %s41 = sphi 0, %s25
    %s45 = sphi 0, %s45
    %s47 = sphi 0, %s45
    %s48 = sphi 0, %s47
    %s62 = sphi 0, %s48
    %s66 = sphi 0, %s66
    %s68 = sphi 0, %s66
    %s69 = sphi 0, %s68
    %s83 = sphi 0, %s69
    %s87 = sphi 0, %s87
    %s89 = sphi 0, %s87
    %s90 = sphi 0, %s89
    %s104 = sphi 0, %s90
    %s108 = sphi 0, %s108
    %s110 = sphi 0, %s108
    %s111 = sphi 0, %s110
    %s125 = sphi 0, %s111
    %s131 = sphi 0, %s133
    %s134 = sphi 0, %s131
    %s135 = sphi 0, %s134
    %s151 = sphi 0, %s135
  $region4: #{pretrained_model_forward.1} parent=0 // loop_header_branch
    %14 = sbr.rel (%p12) target = $region8
  $region5: #{pretrained_model_forward.1} parent=0 // loop_body
    %s16 = ssub.s32 %s11, 1
    %s17 = ssub.s32 %s11, 2
    %s18 = sadd.s32 %s11, 1
    %s19 = ssub.s32 %s11, %s18
    %p20 = scmp.eq.s32.totalorder %s19, 0
    %s22 = sadd.s32 %s21, 1
    %s23 = scalar_select %p20, %s21, %s22
    %p26 = pneg %p20
    %p27 = scmp.eq.s32.totalorder %s11, 1
    %p28 = por %p26, %p27
    %p29 = scmp.ne.s32.totalorder %s21, %s24
    %p30 = scmp.eq.s32.totalorder %s11, 0
    %p31 = por %p29, %p30
    %p32 = scmp.ne.s32.totalorder %s21, %s24
    %p33 = scmp.eq.s32.totalorder %s16, 1
    %p34 = por %p32, %p33
    %p35 = scmp.ne.s32.totalorder %s24, %s25
    %p36 = scmp.eq.s32.totalorder %s16, 0
    %p37 = por %p35, %p36
    %p38 = scmp.ne.s32.totalorder %s24, %s25
    %p39 = scmp.eq.s32.totalorder %s17, 1
    %p40 = por %p38, %p39
    %p42 = scmp.ne.s32.totalorder %s25, %s41
    %p43 = scmp.eq.s32.totalorder %s17, 0
    %p44 = por %p42, %p43
    %s46 = sadd.s32 %s45, 1
    %p49 = scmp.eq.s32.totalorder %s11, 1
    %p50 = scmp.ne.s32.totalorder %s45, %s47
    %p51 = scmp.eq.s32.totalorder %s11, 0
    %p52 = por %p50, %p51
    %p53 = scmp.ne.s32.totalorder %s45, %s47
    %p54 = scmp.eq.s32.totalorder %s16, 1
    %p55 = por %p53, %p54
    %p56 = scmp.ne.s32.totalorder %s47, %s48
    %p57 = scmp.eq.s32.totalorder %s16, 0
    %p58 = por %p56, %p57
    %p59 = scmp.ne.s32.totalorder %s47, %s48
    %p60 = scmp.eq.s32.totalorder %s17, 1
    %p61 = por %p59, %p60
    %p63 = scmp.ne.s32.totalorder %s48, %s62
    %p64 = scmp.eq.s32.totalorder %s17, 0
    %p65 = por %p63, %p64
    %s67 = sadd.s32 %s66, 1
    %p70 = scmp.eq.s32.totalorder %s11, 1
    %p71 = scmp.ne.s32.totalorder %s66, %s68
    %p72 = scmp.eq.s32.totalorder %s11, 0
    %p73 = por %p71, %p72
    %p74 = scmp.ne.s32.totalorder %s66, %s68
    %p75 = scmp.eq.s32.totalorder %s16, 1
    %p76 = por %p74, %p75
    %p77 = scmp.ne.s32.totalorder %s68, %s69
    %p78 = scmp.eq.s32.totalorder %s16, 0
    %p79 = por %p77, %p78
    %p80 = scmp.ne.s32.totalorder %s68, %s69
    %p81 = scmp.eq.s32.totalorder %s17, 1
    %p82 = por %p80, %p81
    %p84 = scmp.ne.s32.totalorder %s69, %s83
    %p85 = scmp.eq.s32.totalorder %s17, 0
    %p86 = por %p84, %p85
    %s88 = sadd.s32 %s87, 1
    %p91 = scmp.eq.s32.totalorder %s11, 1
    %p92 = scmp.ne.s32.totalorder %s87, %s89
    %p93 = scmp.eq.s32.totalorder %s11, 0
    %p94 = por %p92, %p93
    %p95 = scmp.ne.s32.totalorder %s87, %s89
    %p96 = scmp.eq.s32.totalorder %s16, 1
    %p97 = por %p95, %p96
    %p98 = scmp.ne.s32.totalorder %s89, %s90
    %p99 = scmp.eq.s32.totalorder %s16, 0
    %p100 = por %p98, %p99
    %p101 = scmp.ne.s32.totalorder %s89, %s90
    %p102 = scmp.eq.s32.totalorder %s17, 1
    %p103 = por %p101, %p102
    %p105 = scmp.ne.s32.totalorder %s90, %s104
    %p106 = scmp.eq.s32.totalorder %s17, 0
    %p107 = por %p105, %p106
    %s109 = sadd.s32 %s108, 1
    %p112 = scmp.eq.s32.totalorder %s11, 1
    %p113 = scmp.ne.s32.totalorder %s108, %s110
    %p114 = scmp.eq.s32.totalorder %s11, 0
    %p115 = por %p113, %p114
    %p116 = scmp.ne.s32.totalorder %s108, %s110
    %p117 = scmp.eq.s32.totalorder %s16, 1
    %p118 = por %p116, %p117
    %p119 = scmp.ne.s32.totalorder %s110, %s111
    %p120 = scmp.eq.s32.totalorder %s16, 0
    %p121 = por %p119, %p120
    %p122 = scmp.ne.s32.totalorder %s110, %s111
    %p123 = scmp.eq.s32.totalorder %s17, 1
    %p124 = por %p122, %p123
    %p126 = scmp.ne.s32.totalorder %s111, %s125
    %p127 = scmp.eq.s32.totalorder %s17, 0
    %p128 = por %p126, %p127
    %s129 = ssub.s32 %s11, %s18
    %p130 = scmp.eq.s32.totalorder %s129, 0
    %s132 = sadd.s32 %s131, 1
    %s133 = scalar_select %p130, %s131, %s132
    %p136 = pneg %p130
    %p137 = scmp.eq.s32.totalorder %s11, 1
    %p138 = por %p136, %p137
    %p139 = scmp.ne.s32.totalorder %s131, %s134
    %p140 = scmp.eq.s32.totalorder %s11, 0
    %p141 = por %p139, %p140
    %p142 = scmp.ne.s32.totalorder %s131, %s134
    %p143 = scmp.eq.s32.totalorder %s16, 1
    %p144 = por %p142, %p143
    %p145 = scmp.ne.s32.totalorder %s134, %s135
    %p146 = scmp.eq.s32.totalorder %s16, 0
    %p147 = por %p145, %p146
    %p148 = scmp.ne.s32.totalorder %s134, %s135
    %p149 = scmp.eq.s32.totalorder %s17, 1
    %p150 = por %p148, %p149
    %p152 = scmp.ne.s32.totalorder %s135, %s151
    %p153 = scmp.eq.s32.totalorder %s17, 0
    %p154 = por %p152, %p153
    %p155 = scmp.le.s32.totalorder 1, %s11
    %p156 = scmp.lt.s32.totalorder %s11, 3
    %p157 = pnand %p155, %p156
    %p158 = pneg %p157
    // Predicated region
    $region9: #{pretrained_model_forward.1} parent=5 // pred_check
      _
    $region10: #{pretrained_model_forward.1} parent=5 // pred_check_branch
      %160 = sbr.rel (%p157) target = $region12
    $region11: #{pretrained_model_forward.1} parent=5 // pred_region
      %s161 = ssub.s32 %s11, 1
      // Predicated region
      $region13: #{pretrained_model_forward.1} parent=11 // pred_check
        %p162 = pneg %p58
      $region14: #{pretrained_model_forward.1} parent=11 // pred_check_branch
        %164 = sbr.rel (%p162) target = $region16
      $region15: #{pretrained_model_forward.1} parent=11 // pred_region
        _
      $region16: #{pretrained_model_forward.1} parent=11 // pred_fallthru
        _
      // Predicated region
      $region17: #{pretrained_model_forward.1} parent=11 // pred_check
        %p165 = pneg %p79
      $region18: #{pretrained_model_forward.1} parent=11 // pred_check_branch
        %167 = sbr.rel (%p165) target = $region20
      $region19: #{pretrained_model_forward.1} parent=11 // pred_region
        _
      $region20: #{pretrained_model_forward.1} parent=11 // pred_fallthru
        _
      // Predicated region
      $region21: #{pretrained_model_forward.1} parent=11 // pred_check
        %p168 = pneg %p100
      $region22: #{pretrained_model_forward.1} parent=11 // pred_check_branch
        %170 = sbr.rel (%p168) target = $region24
      $region23: #{pretrained_model_forward.1} parent=11 // pred_region
        _
      $region24: #{pretrained_model_forward.1} parent=11 // pred_fallthru
        _
      // Predicated region
      $region25: #{pretrained_model_forward.1} parent=11 // pred_check
        %p171 = pneg %p121
      $region26: #{pretrained_model_forward.1} parent=11 // pred_check_branch
        %173 = sbr.rel (%p171) target = $region28
      $region27: #{pretrained_model_forward.1} parent=11 // pred_region
        _
      $region28: #{pretrained_model_forward.1} parent=11 // pred_fallthru
        _
    $region12: #{pretrained_model_forward.1} parent=5 // pred_fallthru
      _
    %p174 = scmp.lt.s32.totalorder %s11, 2
    // Predicated region
    $region29: #{pretrained_model_forward.1} parent=5 // pred_check
      %p175 = pneg %p174
    $region30: #{pretrained_model_forward.1} parent=5 // pred_check_branch
      %177 = sbr.rel (%p175) target = $region32
    $region31: #{pretrained_model_forward.1} parent=5 // pred_region
      // Predicated region
      $region33: #{pretrained_model_forward.1} parent=31 // pred_check
        %p178 = pneg %p31
      $region34: #{pretrained_model_forward.1} parent=31 // pred_check_branch
        %180 = sbr.rel (%p178) target = $region36
      $region35: #{pretrained_model_forward.1} parent=31 // pred_region
        %s181 = smul.u32 16, %s11
        %p182 = scmp.lt.s32.totalorder %s181, 31
        %s183 = scalar_select %p182, %s181, 31
        %s184 = smul.addr %s183, 8
        %s185 = scalar_lea.vmem %s0, %s184
        %s186 = smul.u32 16, %s11
      $region36: #{pretrained_model_forward.1} parent=31 // pred_fallthru
        _
    $region32: #{pretrained_model_forward.1} parent=5 // pred_fallthru
      _
    %p187 = scmp.le.s32.totalorder 1, %s11
    %p188 = scmp.lt.s32.totalorder %s11, 3
    %p189 = pnand %p187, %p188
    %p190 = pneg %p189
    // Predicated region
    $region37: #{pretrained_model_forward.1} parent=5 // pred_check
      _
    $region38: #{pretrained_model_forward.1} parent=5 // pred_check_branch
      %192 = sbr.rel (%p189) target = $region40
    $region39: #{pretrained_model_forward.1} parent=5 // pred_region
      %s193 = ssub.s32 %s11, 1
      %s194 = smul.u32 16, %s16
      %p195 = scmp.lt.s32.totalorder %s194, 31
      %s196 = scalar_select %p195, %s194, 31
      %s197 = smul.addr %s196, 8
      %s198 = scalar_lea.vmem %s0, %s197
      %p199 = pneg %p37
      %p200 = pneg %p34
      %p201 = pneg %p58
      %p202 = pneg %p55
      %p203 = pneg %p79
      %p204 = pneg %p76
      %p205 = pneg %p100
      %p206 = pneg %p97
      %p207 = pneg %p121
      %p208 = pneg %p118
      %p209 = pneg %p147
      %p210 = pneg %p144
      %s211 = smul.u32 16, %s16
      %p212 = scmp.lt.s32.totalorder %s211, 31
      %s213 = scalar_select %p212, %s211, 31
      %s214 = smul.addr %s213, 8
      %s215 = scalar_lea.vmem %s5, %s214
      %s216 = smul.u32 16, %s16
      %p217 = scmp.lt.s32.totalorder %s216, 31
      %s218 = scalar_select %p217, %s216, 31
      %s219 = smul.addr %s218, 8
      %s220 = scalar_lea.vmem %s0, %s219
      %s221 = smul.u32 16, %s16
      %s222 = smul.u32 16, %s16
      %p223 = scmp.lt.s32.totalorder %s222, 31
      %s224 = scalar_select %p223, %s222, 31
      %s225 = smul.addr %s224, 8
      %s226 = scalar_lea.vmem %s5, %s225
      %s227 = smul.u32 16, %s16
      %v229 = vld [vmem:[%s220] sm:$0xff]
      %v230 = vld [vmem:[%s220 + $0x8] sm:$0xff]
      %v231 = vld [vmem:[%s220 + $0x10] sm:$0xff]
      %v232 = vld [vmem:[%s220 + $0x18] sm:$0xff]
      %v233 = vld [vmem:[%s220 + $0x20] sm:$0xff]
      %v234 = vld [vmem:[%s220 + $0x28] sm:$0xff]
      %v235 = vld [vmem:[%s220 + $0x30] sm:$0xff]
      %v236 = vld [vmem:[%s220 + $0x38] sm:$0xff]
      %v237 = vld [vmem:[%s220 + $0x40] sm:$0xff]
      %v238 = vld [vmem:[%s220 + $0x48] sm:$0xff]
      %v239 = vld [vmem:[%s220 + $0x50] sm:$0xff]
      %v240 = vld [vmem:[%s220 + $0x58] sm:$0xff]
      %v241 = vld [vmem:[%s220 + $0x60] sm:$0xff]
      %v242 = vld [vmem:[%s220 + $0x68] sm:$0xff]
      %v243 = vld [vmem:[%s220 + $0x70] sm:$0xff]
      %v244 = vld [vmem:[%s220 + $0x78] sm:$0xff]
      %v245 = vpack.c.bf16 %v230, %v229
      %v246 = vpack.c.bf16 %v232, %v231
      %v247 = vpack.c.bf16 %v234, %v233
      %v248 = vpack.c.bf16 %v236, %v235
      %v249 = vpack.c.bf16 %v238, %v237
      %v250 = vpack.c.bf16 %v240, %v239
      %v251 = vpack.c.bf16 %v242, %v241
      %v252 = vpack.c.bf16 %v244, %v243
      %v253 = vld [vmem:[%s1] sm:$0xf]
      %v254 = vld [vmem:[%s1 + $0x4] sm:$0xf]
      %v255 = vld [vmem:[%s1 + $0x8] sm:$0xf]
      %v256 = vld [vmem:[%s1 + $0xc] sm:$0xf]
      %v257 = vld [vmem:[%s2] sm:$0x1]
      %v259 = vlaneseq
      %v260 = vshrl.u32 %v259, 7
      %v261 = vsub.s32 0, %v260
      %v262 = vrot.slane %v257, %v261
      %v268 = vunpack.c.l.b16 %v253
      %v269 = vunpack.c.l.b16 %v254
      %v270 = vunpack.c.l.b16 %v255
      %v271 = vunpack.c.l.b16 %v256
      %v272 = vpack.c.b16 %v269, %v268
      %v273 = vpack.c.b16 %v271, %v270
      %vm276 = vcmask 261120
      %v278 = vsel %vm276, %v245, 0
      %v281 = vsel %vm276, %v246, 0
      %v284 = vsel %vm276, %v247, 0
      %v287 = vsel %vm276, %v248, 0
      %v290 = vsel %vm276, %v249, 0
      %v293 = vsel %vm276, %v250, 0
      %v296 = vsel %vm276, %v251, 0
      %v299 = vsel %vm276, %v252, 0
      %301 = vmatprep.subr.bf16.mxu0 0
      %302 = vmatpush1.bf16.msra.mxu0 %v272
      %303 = vmatprep.subr.bf16.mxu0 0
      %304 = vmatpush1.bf16.msra.mxu0 %v273
      %305 = vmatprep.subr.bf16.mxu0 0
      %306 = vmatpush1.bf16.msra.mxu0 0
      %307 = vmatprep.subr.bf16.mxu0 0
      %308 = vmatpush1.bf16.msra.mxu0 0
      %309 = vmatprep.subr.bf16.mxu0 0
      %310 = vmatpush1.bf16.msra.mxu0 0
      %311 = vmatprep.subr.bf16.mxu0 0
      %312 = vmatpush1.bf16.msra.mxu0 0
      %313 = vmatprep.subr.bf16.mxu0 0
      %314 = vmatpush1.bf16.msra.mxu0 0
      %315 = vmatprep.subr.bf16.mxu0 0
      %316 = vmatpush1.bf16.msra.mxu0 0
      %317 = vmatprep.subr.bf16.mxu0 0
      %318 = vmatpush1.bf16.msra.mxu0 0
      %319 = vmatprep.subr.bf16.mxu0 0
      %320 = vmatpush1.bf16.msra.mxu0 0
      %321 = vmatprep.subr.bf16.mxu0 0
      %322 = vmatpush1.bf16.msra.mxu0 0
      %323 = vmatprep.subr.bf16.mxu0 0
      %324 = vmatpush1.bf16.msra.mxu0 0
      %325 = vmatprep.subr.bf16.mxu0 0
      %326 = vmatpush1.bf16.msra.mxu0 0
      %327 = vmatprep.subr.bf16.mxu0 0
      %328 = vmatpush1.bf16.msra.mxu0 0
      %329 = vmatprep.subr.bf16.mxu0 0
      %330 = vmatpush1.bf16.msra.mxu0 0
      %331 = vmatprep.subr.bf16.mxu0 0
      %332 = vmatpush1.bf16.msra.mxu0 0
      %333 = vmatprep.mubr.bf16.mxu0 0
      %334 = vmatmul.mubr.bf16.gmra.mrb[0].mxu0 %v278
      %v335 = vpop.f32.mrb[0].mxu0
      %v336 = vadd.f32 %v262, %v335
      %v337 = vpop.f32.mrb[0].mxu0
      %v338 = vpop.f32.mrb[0].mxu0
      %v339 = vadd.f32 %v262, %v338
      %v340 = vpop.f32.mrb[0].mxu0
      %341 = vmatprep.mubr.bf16.mxu0 0
      %342 = vmatmul.mubr.bf16.gmra.mrb[0].mxu0 %v281
      %v343 = vpop.f32.mrb[0].mxu0
      %v344 = vadd.f32 %v262, %v343
      %v345 = vpop.f32.mrb[0].mxu0
      %v346 = vpop.f32.mrb[0].mxu0
      %v347 = vadd.f32 %v262, %v346
      %v348 = vpop.f32.mrb[0].mxu0
      %349 = vmatprep.mubr.bf16.mxu0 0
      %350 = vmatmul.mubr.bf16.gmra.mrb[0].mxu0 %v284
      %v351 = vpop.f32.mrb[0].mxu0
      %v352 = vadd.f32 %v262, %v351
      %v353 = vpop.f32.mrb[0].mxu0
      %v354 = vpop.f32.mrb[0].mxu0
      %v355 = vadd.f32 %v262, %v354
      %v356 = vpop.f32.mrb[0].mxu0
      %357 = vmatprep.mubr.bf16.mxu0 0
      %358 = vmatmul.mubr.bf16.gmra.mrb[0].mxu0 %v287
      %v359 = vpop.f32.mrb[0].mxu0
      %v360 = vadd.f32 %v262, %v359
      %v361 = vpop.f32.mrb[0].mxu0
      %v362 = vpop.f32.mrb[0].mxu0
      %v363 = vadd.f32 %v262, %v362
      %v364 = vpop.f32.mrb[0].mxu0
      %365 = vmatprep.mubr.bf16.mxu0 0
      %366 = vmatmul.mubr.bf16.gmra.mrb[0].mxu0 %v290
      %v367 = vpop.f32.mrb[0].mxu0
      %v368 = vadd.f32 %v262, %v367
      %v369 = vpop.f32.mrb[0].mxu0
      %v370 = vpop.f32.mrb[0].mxu0
      %v371 = vadd.f32 %v262, %v370
      %v372 = vpop.f32.mrb[0].mxu0
      %373 = vmatprep.mubr.bf16.mxu0 0
      %374 = vmatmul.mubr.bf16.gmra.mrb[0].mxu0 %v293
      %v375 = vpop.f32.mrb[0].mxu0
      %v376 = vadd.f32 %v262, %v375
      %v377 = vpop.f32.mrb[0].mxu0
      %v378 = vpop.f32.mrb[0].mxu0
      %v379 = vadd.f32 %v262, %v378
      %v380 = vpop.f32.mrb[0].mxu0
      %381 = vmatprep.mubr.bf16.mxu0 0
      %382 = vmatmul.mubr.bf16.gmra.mrb[0].mxu0 %v296
      %v383 = vpop.f32.mrb[0].mxu0
      %v384 = vadd.f32 %v262, %v383
      %v385 = vpop.f32.mrb[0].mxu0
      %v386 = vpop.f32.mrb[0].mxu0
      %v387 = vadd.f32 %v262, %v386
      %v388 = vpop.f32.mrb[0].mxu0
      %389 = vmatprep.mubr.bf16.mxu0 0
      %390 = vmatmul.mubr.bf16.gmra.mrb[0].mxu0 %v299
      %v391 = vpop.f32.mrb[0].mxu0
      %v392 = vadd.f32 %v262, %v391
      %v393 = vpop.f32.mrb[0].mxu0
      %v394 = vpop.f32.mrb[0].mxu0
      %v395 = vadd.f32 %v262, %v394
      %v396 = vpop.f32.mrb[0].mxu0
      %397 = vdwg.mxu0
      %v398 = vmax.f32 %v336, 0.0
      %v399 = vmax.f32 %v339, 0.0
      %v400 = vmax.f32 %v344, 0.0
      %v401 = vmax.f32 %v347, 0.0
      %v402 = vmax.f32 %v352, 0.0
      %v403 = vmax.f32 %v355, 0.0
      %v404 = vmax.f32 %v360, 0.0
      %v405 = vmax.f32 %v363, 0.0
      %v406 = vmax.f32 %v368, 0.0
      %v407 = vmax.f32 %v371, 0.0
      %v408 = vmax.f32 %v376, 0.0
      %v409 = vmax.f32 %v379, 0.0
      %v410 = vmax.f32 %v384, 0.0
      %v411 = vmax.f32 %v387, 0.0
      %v412 = vmax.f32 %v392, 0.0
      %v413 = vmax.f32 %v395, 0.0
      %v414 = vpack.c.bf16 %v399, %v398
      %v415 = vpack.c.bf16 %v401, %v400
      %v416 = vpack.c.bf16 %v403, %v402
      %v417 = vpack.c.bf16 %v405, %v404
      %v418 = vpack.c.bf16 %v407, %v406
      %v419 = vpack.c.bf16 %v409, %v408
      %v420 = vpack.c.bf16 %v411, %v410
      %v421 = vpack.c.bf16 %v413, %v412
      %v422 = vld [vmem:[%s3] sm:$0xf]
      %v423 = vld [vmem:[%s3 + $0x4] sm:$0xf]
      %v424 = vld [vmem:[%s3 + $0x8] sm:$0xf]
      %v425 = vld [vmem:[%s3 + $0xc] sm:$0xf]
      %v426 = vld [vmem:[%s3 + $0x10] sm:$0xf]
      %v427 = vld [vmem:[%s3 + $0x14] sm:$0xf]
      %v428 = vld [vmem:[%s3 + $0x18] sm:$0xf]
      %v429 = vld [vmem:[%s3 + $0x1c] sm:$0xf]
      %v430 = vld [vmem:[%s3 + $0x20] sm:$0xf]
      %v431 = vld [vmem:[%s3 + $0x24] sm:$0xf]
      %v432 = vld [vmem:[%s3 + $0x28] sm:$0xf]
      %v433 = vld [vmem:[%s3 + $0x2c] sm:$0xf]
      %v434 = vld [vmem:[%s3 + $0x30] sm:$0xf]
      %v435 = vld [vmem:[%s3 + $0x34] sm:$0xf]
      %v436 = vld [vmem:[%s3 + $0x38] sm:$0xf]
      %v437 = vld [vmem:[%s3 + $0x3c] sm:$0xf]
      %v438 = vld [vmem:[%s4] sm:$0x1]
      %v440 = vlaneseq
      %v441 = vshrl.u32 %v440, 7
      %v442 = vsub.s32 0, %v441
      %v443 = vrot.slane %v438, %v442
      %v461 = vunpack.c.l.b16 %v422
      %v462 = vunpack.c.l.b16 %v423
      %v463 = vunpack.c.l.b16 %v424
      %v464 = vunpack.c.l.b16 %v425
      %v465 = vunpack.c.l.b16 %v426
      %v466 = vunpack.c.l.b16 %v427
      %v467 = vunpack.c.l.b16 %v428
      %v468 = vunpack.c.l.b16 %v429
      %v469 = vunpack.c.l.b16 %v430
      %v470 = vunpack.c.l.b16 %v431
      %v471 = vunpack.c.l.b16 %v432
      %v472 = vunpack.c.l.b16 %v433
      %v473 = vunpack.c.l.b16 %v434
      %v474 = vunpack.c.l.b16 %v435
      %v475 = vunpack.c.l.b16 %v436
      %v476 = vunpack.c.l.b16 %v437
      %v477 = vpack.c.b16 %v462, %v461
      %v478 = vpack.c.b16 %v464, %v463
      %v479 = vpack.c.b16 %v466, %v465
      %v480 = vpack.c.b16 %v468, %v467
      %v481 = vpack.c.b16 %v470, %v469
      %v482 = vpack.c.b16 %v472, %v471
      %v483 = vpack.c.b16 %v474, %v473
      %v484 = vpack.c.b16 %v476, %v475
      %493 = vmatprep.subr.bf16.mxu0 0
      %494 = vmatpush1.bf16.msra.mxu0 %v477
      %495 = vmatprep.subr.bf16.mxu0 0
      %496 = vmatpush1.bf16.msra.mxu0 %v478
      %497 = vmatprep.subr.bf16.mxu0 0
      %498 = vmatpush1.bf16.msra.mxu0 %v479
      %499 = vmatprep.subr.bf16.mxu0 0
      %500 = vmatpush1.bf16.msra.mxu0 %v480
      %501 = vmatprep.subr.bf16.mxu0 0
      %502 = vmatpush1.bf16.msra.mxu0 %v481
      %503 = vmatprep.subr.bf16.mxu0 0
      %504 = vmatpush1.bf16.msra.mxu0 %v482
      %505 = vmatprep.subr.bf16.mxu0 0
      %506 = vmatpush1.bf16.msra.mxu0 %v483
      %507 = vmatprep.subr.bf16.mxu0 0
      %508 = vmatpush1.bf16.msra.mxu0 %v484
      %509 = vmatprep.subr.bf16.mxu0 0
      %510 = vmatpush1.bf16.msra.mxu0 0
      %511 = vmatprep.subr.bf16.mxu0 0
      %512 = vmatpush1.bf16.msra.mxu0 0
      %513 = vmatprep.subr.bf16.mxu0 0
      %514 = vmatpush1.bf16.msra.mxu0 0
      %515 = vmatprep.subr.bf16.mxu0 0
      %516 = vmatpush1.bf16.msra.mxu0 0
      %517 = vmatprep.subr.bf16.mxu0 0
      %518 = vmatpush1.bf16.msra.mxu0 0
      %519 = vmatprep.subr.bf16.mxu0 0
      %520 = vmatpush1.bf16.msra.mxu0 0
      %521 = vmatprep.subr.bf16.mxu0 0
      %522 = vmatpush1.bf16.msra.mxu0 0
      %523 = vmatprep.subr.bf16.mxu0 0
      %524 = vmatpush1.bf16.msra.mxu0 0
      %525 = vmatprep.mubr.bf16.mxu0 0
      %526 = vmatmul.mubr.bf16.gmra.mrb[0].mxu0 %v414
      %v527 = vpop.f32.mrb[0].mxu0
      %v528 = vadd.f32 %v443, %v527
      %v529 = vpop.f32.mrb[0].mxu0
      %v530 = vpop.f32.mrb[0].mxu0
      %v531 = vadd.f32 %v443, %v530
      %v532 = vpop.f32.mrb[0].mxu0
      %533 = vmatprep.mubr.bf16.mxu0 0
      %534 = vmatmul.mubr.bf16.gmra.mrb[0].mxu0 %v415
      %v535 = vpop.f32.mrb[0].mxu0
      %v536 = vadd.f32 %v443, %v535
      %v537 = vpop.f32.mrb[0].mxu0
      %v538 = vpop.f32.mrb[0].mxu0
      %v539 = vadd.f32 %v443, %v538
      %v540 = vpop.f32.mrb[0].mxu0
      %541 = vmatprep.mubr.bf16.mxu0 0
      %542 = vmatmul.mubr.bf16.gmra.mrb[0].mxu0 %v416
      %v543 = vpop.f32.mrb[0].mxu0
      %v544 = vadd.f32 %v443, %v543
      %v545 = vpop.f32.mrb[0].mxu0
      %v546 = vpop.f32.mrb[0].mxu0
      %v547 = vadd.f32 %v443, %v546
      %v548 = vpop.f32.mrb[0].mxu0
      %549 = vmatprep.mubr.bf16.mxu0 0
      %550 = vmatmul.mubr.bf16.gmra.mrb[0].mxu0 %v417
      %v551 = vpop.f32.mrb[0].mxu0
      %v552 = vadd.f32 %v443, %v551
      %v553 = vpop.f32.mrb[0].mxu0
      %v554 = vpop.f32.mrb[0].mxu0
      %v555 = vadd.f32 %v443, %v554
      %v556 = vpop.f32.mrb[0].mxu0
      %557 = vmatprep.mubr.bf16.mxu0 0
      %558 = vmatmul.mubr.bf16.gmra.mrb[0].mxu0 %v418
      %v559 = vpop.f32.mrb[0].mxu0
      %v560 = vadd.f32 %v443, %v559
      %v561 = vpop.f32.mrb[0].mxu0
      %v562 = vpop.f32.mrb[0].mxu0
      %v563 = vadd.f32 %v443, %v562
      %v564 = vpop.f32.mrb[0].mxu0
      %565 = vmatprep.mubr.bf16.mxu0 0
      %566 = vmatmul.mubr.bf16.gmra.mrb[0].mxu0 %v419
      %v567 = vpop.f32.mrb[0].mxu0
      %v568 = vadd.f32 %v443, %v567
      %v569 = vpop.f32.mrb[0].mxu0
      %v570 = vpop.f32.mrb[0].mxu0
      %v571 = vadd.f32 %v443, %v570
      %v572 = vpop.f32.mrb[0].mxu0
      %573 = vmatprep.mubr.bf16.mxu0 0
      %574 = vmatmul.mubr.bf16.gmra.mrb[0].mxu0 %v420
      %v575 = vpop.f32.mrb[0].mxu0
      %v576 = vadd.f32 %v443, %v575
      %v577 = vpop.f32.mrb[0].mxu0
      %v578 = vpop.f32.mrb[0].mxu0
      %v579 = vadd.f32 %v443, %v578
      %v580 = vpop.f32.mrb[0].mxu0
      %581 = vmatprep.mubr.bf16.mxu0 0
      %582 = vmatmul.mubr.bf16.gmra.mrb[0].mxu0 %v421
      %v583 = vpop.f32.mrb[0].mxu0
      %v584 = vadd.f32 %v443, %v583
      %v585 = vpop.f32.mrb[0].mxu0
      %v586 = vpop.f32.mrb[0].mxu0
      %v587 = vadd.f32 %v443, %v586
      %v588 = vpop.f32.mrb[0].mxu0
      %589 = vdwg.mxu0
      %590 = vst [vmem:[%s226] sm:$0xff] %v528
      %591 = vst [vmem:[%s226 + $0x8] sm:$0xff] %v531
      %592 = vst [vmem:[%s226 + $0x10] sm:$0xff] %v536
      %593 = vst [vmem:[%s226 + $0x18] sm:$0xff] %v539
      %594 = vst [vmem:[%s226 + $0x20] sm:$0xff] %v544
      %595 = vst [vmem:[%s226 + $0x28] sm:$0xff] %v547
      %596 = vst [vmem:[%s226 + $0x30] sm:$0xff] %v552
      %597 = vst [vmem:[%s226 + $0x38] sm:$0xff] %v555
      %598 = vst [vmem:[%s226 + $0x40] sm:$0xff] %v560
      %599 = vst [vmem:[%s226 + $0x48] sm:$0xff] %v563
      %600 = vst [vmem:[%s226 + $0x50] sm:$0xff] %v568
      %601 = vst [vmem:[%s226 + $0x58] sm:$0xff] %v571
      %602 = vst [vmem:[%s226 + $0x60] sm:$0xff] %v576
      %603 = vst [vmem:[%s226 + $0x68] sm:$0xff] %v579
      %604 = vst [vmem:[%s226 + $0x70] sm:$0xff] %v584
      %605 = vst [vmem:[%s226 + $0x78] sm:$0xff] %v587
      %s606 = smul.u32 16, %s16
      %p607 = scmp.lt.s32.totalorder %s606, 31
      %s608 = scalar_select %p607, %s606, 31
      %s609 = smul.addr %s608, 8
      %s610 = scalar_lea.vmem %s5, %s609
      // Predicated region
      $region41: #{pretrained_model_forward.1} parent=39 // pred_check
        %p611 = pneg %p144
      $region42: #{pretrained_model_forward.1} parent=39 // pred_check_branch
        %613 = sbr.rel (%p611) target = $region44
      $region43: #{pretrained_model_forward.1} parent=39 // pred_region
        %s614 = smul.u32 16, %s16
      $region44: #{pretrained_model_forward.1} parent=39 // pred_fallthru
        _
    $region40: #{pretrained_model_forward.1} parent=5 // pred_fallthru
      _
    %p615 = scmp.le.s32.totalorder 2, %s11
    // Predicated region
    $region45: #{pretrained_model_forward.1} parent=5 // pred_check
      %p616 = pneg %p615
    $region46: #{pretrained_model_forward.1} parent=5 // pred_check_branch
      %618 = sbr.rel (%p616) target = $region48
    $region47: #{pretrained_model_forward.1} parent=5 // pred_region
      %s619 = ssub.s32 %s11, 2
      // Predicated region
      $region49: #{pretrained_model_forward.1} parent=47 // pred_check
        %p620 = pneg %p150
      $region50: #{pretrained_model_forward.1} parent=47 // pred_check_branch
        %622 = sbr.rel (%p620) target = $region52
      $region51: #{pretrained_model_forward.1} parent=47 // pred_region
        %s623 = smul.u32 16, %s17
        %p624 = scmp.lt.s32.totalorder %s623, 31
        %s625 = scalar_select %p624, %s623, 31
        %s626 = smul.addr %s625, 8
        %s627 = scalar_lea.vmem %s5, %s626
      $region52: #{pretrained_model_forward.1} parent=47 // pred_fallthru
        _
    $region48: #{pretrained_model_forward.1} parent=5 // pred_fallthru
      _
  $region6: #{pretrained_model_forward.1} parent=0 // loop_footer
    %s15 = sadd.s32 1, %s11
  $region7: #{pretrained_model_forward.1} parent=0 // loop_footer_branch
    %10 = sbr.rel target = $region3
  $region8: #{pretrained_model_forward.1} parent=0 // loop_exit
    _

</llo_original>
